<compile_context>
chip_gen: v5e
topology: v5e:2x2
jax: 0.10.0
libtpu: 0.0.40
codegen_flags: <defaults>
</compile_context>

<pallas_src>
import functools

import jax
import jax.numpy as jnp
from jax.experimental import pallas as pl
from jax.experimental.pallas import tpu as pltpu


def _focal_kernel(preds_ref, labels_ref, out_ref, *, alpha, gamma, num_classes,
                  r_total, tile_r):
    """One (tile_r, L) pixel block.

    preds_ref : (C, tile_r, L) logits (any float dtype; cast per class read)
    labels_ref: (tile_r, L)    integer class ids (native dtype)
    out_ref   : (1, 8, 128)    per-block partial-sum slab (lane dense)
    """
    t = pl.program_id(1)

    labels = labels_ref[...]                       # native int dtype

    # ---- pass 1: running max over classes (only `m` stays live) ------------
    m = preds_ref[0].astype(jnp.float32)
    for c in range(1, num_classes):
        m = jnp.maximum(m, preds_ref[c].astype(jnp.float32))

    # ---- pass 2: exp + running sum + select-at-label in a single sweep -----
    # NOTE: labels outside [0, num_classes) silently fall back to class 0 via
    # the where-chain (PyTorch gather would error) — no ignore_index support.
    a_t = jnp.full(labels.shape, jnp.float32(alpha[0]), dtype=jnp.float32)
    se = None
    z_t = None
    e_t = None
    for c in range(num_classes):
        z = preds_ref[c].astype(jnp.float32) - m
        e = jnp.exp(z)
        se = e if se is None else se + e
        if c == 0:
            z_t, e_t = z, e
        else:
            is_c = labels == c
            z_t = jnp.where(is_c, z, z_t)
            e_t = jnp.where(is_c, e, e_t)
            a_t = jnp.where(is_c, jnp.float32(alpha[c]), a_t)

    lse = jnp.log(se)
    logp_t = z_t - lse                             # log-softmax at label class
    # Exact divide keeps the tight reference tolerance; on v7x this could be
    # p_t = e_t * pl.reciprocal(se, approx=True) to relieve the EUP slot.
    p_t = e_t / se
    u = 1.0 - p_t                                  # >= 0

    g = float(gamma)
    if g == 0.0:
        pw = jnp.ones_like(u)
    elif g.is_integer() and g > 0:
        pw = u
        for _ in range(int(g) - 1):                # gamma=2 -> u*u, no pow/EUP
            pw = pw * u
    else:
        # non-integer gamma: clamp so log stays finite under fp rounding
        pw = jnp.exp(jnp.float32(g) * jnp.log(jnp.maximum(u, jnp.float32(1e-30))))

    loss = -(a_t * pw * logp_t)                    # (tile_r, L)

    # Hot path: unmasked partial sum into a lane-dense (1, 8, 128) slab.
    out_ref[...] = jnp.full(out_ref.shape, jnp.sum(loss), dtype=jnp.float32)

    # Only the ragged last tile pays for the validity mask.
    if r_total % tile_r != 0:
        @pl.when(t == pl.num_programs(1) - 1)
        def _():
            row = jax.lax.broadcasted_iota(jnp.int32, loss.shape, 0)
            valid = (t * tile_r + row) < r_total
            out_ref[...] = jnp.full(
                out_ref.shape,
                jnp.sum(jnp.where(valid, loss, jnp.float32(0.0))),
                dtype=jnp.float32)


def focal_loss_pallas(preds, labels, alpha_vec, *, gamma=2.0, size_average=True,
                      preds_block_bytes=2 << 20):
    """preds: [B, C, H, W] float, labels: [B, H, W] int, alpha_vec: [C]."""
    B, C, H, W = preds.shape
    assert labels.shape == (B, H, W)
    alpha = tuple(float(a) for a in alpha_vec)
    assert len(alpha) == C

    P = H * W
    # Lane-dense view: flatten the contiguous (H, W) trailing dims onto a
    # 128-wide lane axis whenever possible (metadata-only for NCHW layouts).
    if P % 128 == 0:
        R, L = P // 128, 128
        preds_v = preds.reshape(B, C, R, L)
        labels_v = labels.reshape(B, R, L)     # native dtype, no wrapper cast
    else:
        R, L = H, W                            # block last dim = full W
        preds_v = preds
        labels_v = labels

    # ~2 MiB of preds per block: big enough to amortize the ~0.35 us/step
    # pipeline overhead on every generation, small enough (with the slim live
    # set in the kernel body) for v5e's 16 MiB / v7x's 32 MiB scoped VMEM.
    itemsize = preds.dtype.itemsize
    pix_per_block = max(8 * L, preds_block_bytes // (C * itemsize))
    tile_r = min(R, max(1, pix_per_block // L))
    if tile_r < R:
        tile_r = min(R, max(8, (tile_r // 8) * 8))   # multiple of 8 or full R
    grid_r = pl.cdiv(R, tile_r)
    # Megacore (v7x): keep at least two blocks in flight when there is work.
    if B * grid_r < 2 and R > 8:
        tile_r = min(R, max(8, (((R + 1) // 2) // 8) * 8))
        grid_r = pl.cdiv(R, tile_r)
    grid = (B, grid_r)

    kernel = functools.partial(
        _focal_kernel, alpha=alpha, gamma=float(gamma), num_classes=C,
        r_total=R, tile_r=tile_r)

    n_pix = B * P
    cost = pl.CostEstimate(
        flops=10 * C * n_pix,                       # elementwise VPU work
        transcendentals=(C + 2) * n_pix,            # C*exp + log + div
        bytes_accessed=(n_pix * C * itemsize
                        + n_pix * labels.dtype.itemsize
                        + B * grid_r * 8 * 128 * 4))

    partials = pl.pallas_call(
        kernel,
        out_shape=jax.ShapeDtypeStruct((B, grid_r, 8, 128), jnp.float32),
        grid=grid,
        in_specs=[
            # preds [B, C, R, L] -> block (C, tile_r, L)
            pl.BlockSpec((None, C, tile_r, L), lambda b, t: (b, 0, t, 0)),
            # labels [B, R, L] -> block (tile_r, L), native int dtype
            pl.BlockSpec((None, tile_r, L), lambda b, t: (b, t, 0)),
        ],
        # one lane-dense (8, 128) partial-sum slab per grid block
        out_specs=pl.BlockSpec((None, 1, 8, 128), lambda b, t: (b, t, 0, 0)),
        compiler_params=pltpu.CompilerParams(
            dimension_semantics=("parallel", "parallel"),
            vmem_limit_bytes=32 * 1024 * 1024),
        cost_estimate=cost,
    )(preds_v, labels_v)

    total = jnp.sum(partials[:, :, 0, 0])
    if size_average:
        return total / jnp.float32(B * H * W)
    return total


def focal_loss_ref(preds, labels, alpha_vec, *, gamma=2.0, size_average=True):
    B, C, H, W = preds.shape
    x = jnp.transpose(preds, (0, 2, 3, 1)).reshape(-1, C).astype(jnp.float32)
    y = labels.reshape(-1).astype(jnp.int32)
    logp = jax.nn.log_softmax(x, axis=1)
    p = jnp.exp(logp)
    p_t = jnp.take_along_axis(p, y[:, None], axis=1)[:, 0]
    logp_t = jnp.take_along_axis(logp, y[:, None], axis=1)[:, 0]
    a_t = alpha_vec[y]
    loss = -a_t * jnp.power(1.0 - p_t, gamma) * logp_t
    return jnp.mean(loss) if size_average else jnp.sum(loss)


if __name__ == "__main__":
    # Module config: alpha=0.25 (scalar), gamma=2, num_classes=3, size_average=True
    num_classes = 3
    alpha_scalar = 0.25
    gamma = 2.0
    alpha_vec = jnp.concatenate([
        jnp.array([alpha_scalar], dtype=jnp.float32),
        jnp.full((num_classes - 1,), 1.0 - alpha_scalar, dtype=jnp.float32),
    ])  # [0.25, 0.75, 0.75]

    # Deterministic small inputs: preds [B, C, H, W], labels [B, H, W]
    B, C, H, W = 2, num_classes, 16, 16
    key = jax.random.PRNGKey(0)
    k1, k2 = jax.random.split(key)
    preds = jax.random.normal(k1, (B, C, H, W), dtype=jnp.float32)
    labels = jax.random.randint(k2, (B, H, W), 0, num_classes, dtype=jnp.int32)

    loss = focal_loss_pallas(preds, labels, alpha_vec, gamma=gamma,
                             size_average=True)
    loss = jax.block_until_ready(loss)

    ref = focal_loss_ref(preds, labels, alpha_vec, gamma=gamma, size_average=True)
    assert jnp.allclose(loss, ref, rtol=1e-4, atol=1e-6), (loss, ref)
    print("KERNEL_OK")
</pallas_src>

<mosaic_0001>
module attributes {stable_mosaic.version = 11 : i64} {
  func.func @_focal_kernel(%arg0: i32, %arg1: i32, %arg2: memref<1x3x2x128xf32, #tpu.memory_space<vmem>>, %arg3: memref<1x2x128xi32, #tpu.memory_space<vmem>>, %arg4: memref<1x1x8x128xf32, #tpu.memory_space<vmem>>) attributes {dimension_semantics = [#tpu.dimension_semantics<parallel>, #tpu.dimension_semantics<parallel>], iteration_bounds = array<i64: 2, 1>, scalar_prefetch = 0 : i64, scratch_operands = 0 : i64, tpu.core_type = #tpu.core_type<tc>, window_params = [{transform_indices = @transform_0, window_bounds = array<i64: 1, 3, 2, 128>}, {transform_indices = @transform_1, window_bounds = array<i64: 1, 2, 128>}, {transform_indices = @transform_2, window_bounds = array<i64: 1, 1, 8, 128>}]} {
    %c0 = arith.constant 0 : index
    %c0_0 = arith.constant 0 : index
    %c0_1 = arith.constant 0 : index
    %0 = vector.load %arg3[%c0, %c0_0, %c0_1] : memref<1x2x128xi32, #tpu.memory_space<vmem>>, vector<1x2x128xi32>
    %1 = vector.shape_cast %0 : vector<1x2x128xi32> to vector<2x128xi32>
    %c0_2 = arith.constant 0 : index
    %c0_3 = arith.constant 0 : index
    %c0_4 = arith.constant 0 : index
    %c0_5 = arith.constant 0 : index
    %2 = vector.load %arg2[%c0_2, %c0_3, %c0_4, %c0_5] : memref<1x3x2x128xf32, #tpu.memory_space<vmem>>, vector<1x1x2x128xf32>
    %3 = vector.shape_cast %2 : vector<1x1x2x128xf32> to vector<2x128xf32>
    %c0_6 = arith.constant 0 : index
    %c1 = arith.constant 1 : index
    %c0_7 = arith.constant 0 : index
    %c0_8 = arith.constant 0 : index
    %4 = vector.load %arg2[%c0_6, %c1, %c0_7, %c0_8] : memref<1x3x2x128xf32, #tpu.memory_space<vmem>>, vector<1x1x2x128xf32>
    %5 = vector.shape_cast %4 : vector<1x1x2x128xf32> to vector<2x128xf32>
    %6 = arith.maximumf %3, %5 : vector<2x128xf32>
    %c0_9 = arith.constant 0 : index
    %c2 = arith.constant 2 : index
    %c0_10 = arith.constant 0 : index
    %c0_11 = arith.constant 0 : index
    %7 = vector.load %arg2[%c0_9, %c2, %c0_10, %c0_11] : memref<1x3x2x128xf32, #tpu.memory_space<vmem>>, vector<1x1x2x128xf32>
    %8 = vector.shape_cast %7 : vector<1x1x2x128xf32> to vector<2x128xf32>
    %9 = arith.maximumf %6, %8 : vector<2x128xf32>
    %cst = arith.constant 2.500000e-01 : f32
    %10 = vector.broadcast %cst : f32 to vector<2x128xf32>
    %c0_12 = arith.constant 0 : index
    %c0_13 = arith.constant 0 : index
    %c0_14 = arith.constant 0 : index
    %c0_15 = arith.constant 0 : index
    %11 = vector.load %arg2[%c0_12, %c0_13, %c0_14, %c0_15] : memref<1x3x2x128xf32, #tpu.memory_space<vmem>>, vector<1x1x2x128xf32>
    %12 = vector.shape_cast %11 : vector<1x1x2x128xf32> to vector<2x128xf32>
    %13 = arith.subf %12, %9 : vector<2x128xf32>
    %14 = math.exp %13 : vector<2x128xf32>
    %c0_16 = arith.constant 0 : index
    %c1_17 = arith.constant 1 : index
    %c0_18 = arith.constant 0 : index
    %c0_19 = arith.constant 0 : index
    %15 = vector.load %arg2[%c0_16, %c1_17, %c0_18, %c0_19] : memref<1x3x2x128xf32, #tpu.memory_space<vmem>>, vector<1x1x2x128xf32>
    %16 = vector.shape_cast %15 : vector<1x1x2x128xf32> to vector<2x128xf32>
    %17 = arith.subf %16, %9 : vector<2x128xf32>
    %18 = math.exp %17 : vector<2x128xf32>
    %19 = arith.addf %14, %18 : vector<2x128xf32>
    %c1_i32 = arith.constant 1 : i32
    %20 = vector.broadcast %c1_i32 : i32 to vector<2x128xi32>
    %21 = arith.cmpi eq, %1, %20 : vector<2x128xi32>
    %22 = arith.select %21, %17, %13 : vector<2x128xi1>, vector<2x128xf32>
    %23 = arith.select %21, %18, %14 : vector<2x128xi1>, vector<2x128xf32>
    %cst_20 = arith.constant 7.500000e-01 : f32
    %24 = vector.broadcast %cst_20 : f32 to vector<2x128xf32>
    %25 = arith.select %21, %24, %10 : vector<2x128xi1>, vector<2x128xf32>
    %c0_21 = arith.constant 0 : index
    %c2_22 = arith.constant 2 : index
    %c0_23 = arith.constant 0 : index
    %c0_24 = arith.constant 0 : index
    %26 = vector.load %arg2[%c0_21, %c2_22, %c0_23, %c0_24] : memref<1x3x2x128xf32, #tpu.memory_space<vmem>>, vector<1x1x2x128xf32>
    %27 = vector.shape_cast %26 : vector<1x1x2x128xf32> to vector<2x128xf32>
    %28 = arith.subf %27, %9 : vector<2x128xf32>
    %29 = math.exp %28 : vector<2x128xf32>
    %30 = arith.addf %19, %29 : vector<2x128xf32>
    %c2_i32 = arith.constant 2 : i32
    %31 = vector.broadcast %c2_i32 : i32 to vector<2x128xi32>
    %32 = arith.cmpi eq, %1, %31 : vector<2x128xi32>
    %33 = arith.select %32, %28, %22 : vector<2x128xi1>, vector<2x128xf32>
    %34 = arith.select %32, %29, %23 : vector<2x128xi1>, vector<2x128xf32>
    %cst_25 = arith.constant 7.500000e-01 : f32
    %35 = vector.broadcast %cst_25 : f32 to vector<2x128xf32>
    %36 = arith.select %32, %35, %25 : vector<2x128xi1>, vector<2x128xf32>
    %37 = math.log %30 : vector<2x128xf32>
    %38 = arith.subf %33, %37 : vector<2x128xf32>
    %39 = arith.divf %34, %30 : vector<2x128xf32>
    %cst_26 = arith.constant 1.000000e+00 : f32
    %40 = vector.broadcast %cst_26 : f32 to vector<2x128xf32>
    %41 = arith.subf %40, %39 : vector<2x128xf32>
    %42 = arith.mulf %41, %41 : vector<2x128xf32>
    %43 = arith.mulf %36, %42 : vector<2x128xf32>
    %44 = arith.mulf %43, %38 : vector<2x128xf32>
    %cst_27 = arith.constant 0.000000e+00 : f32
    %45 = vector.broadcast %cst_27 : f32 to vector<2x128xf32>
    %46 = arith.subf %45, %44 : vector<2x128xf32>
    %47 = vector.shape_cast %46 : vector<2x128xf32> to vector<1x2x128xf32>
    %cst_28 = arith.constant dense<0.000000e+00> : vector<1xf32>
    %48 = vector.multi_reduction <add>, %47, %cst_28 [1, 2] : vector<1x2x128xf32> to vector<1xf32>
    %49 = vector.shape_cast %48 : vector<1xf32> to vector<1x1x1xf32>
    %50 = vector.extract %49[0, 0, 0] : f32 from vector<1x1x1xf32>
    %51 = vector.broadcast %50 : f32 to vector<1x8x128xf32>
    %c0_29 = arith.constant 0 : index
    %c0_30 = arith.constant 0 : index
    %c0_31 = arith.constant 0 : index
    %c0_32 = arith.constant 0 : index
    %52 = vector.load %arg4[%c0_29, %c0_30, %c0_31, %c0_32] : memref<1x1x8x128xf32, #tpu.memory_space<vmem>>, vector<1x1x8x128xf32>
    %53 = vector.shape_cast %52 : vector<1x1x8x128xf32> to vector<1x8x128xf32>
    %54 = vector.shape_cast %51 : vector<1x8x128xf32> to vector<1x1x8x128xf32>
    tpu.vector_store %arg4[%c0_29, %c0_30, %c0_31, %c0_32], %54 {strides = array<i32>} : memref<1x1x8x128xf32, #tpu.memory_space<vmem>>, vector<1x1x8x128xf32>,
    return
  }
  func.func @transform_0(%arg0: i32, %arg1: i32) -> (i32, i32, i32, i32) {
    %c0_i32 = arith.constant 0 : i32
    %c0_i32_0 = arith.constant 0 : i32
    %c0_i32_1 = arith.constant 0 : i32
    return %arg0, %c0_i32, %arg1, %c0_i32_0 : i32, i32, i32, i32
  }
  func.func @transform_1(%arg0: i32, %arg1: i32) -> (i32, i32, i32) {
    %c0_i32 = arith.constant 0 : i32
    %c0_i32_0 = arith.constant 0 : i32
    return %arg0, %arg1, %c0_i32 : i32, i32, i32
  }
  func.func @transform_2(%arg0: i32, %arg1: i32) -> (i32, i32, i32, i32) {
    %c0_i32 = arith.constant 0 : i32
    %c0_i32_0 = arith.constant 0 : i32
    %c0_i32_1 = arith.constant 0 : i32
    return %arg0, %arg1, %c0_i32, %c0_i32_0 : i32, i32, i32, i32
  }
}

</mosaic_0001>

<llo_original>
// kernel: tpu_custom_call.1
$region0: #{tpu_custom_call.1}
  #allocation0 [shape = 'u32[]', space=smem, size = 0x4, offset = 0x4, fixed_abs, tag = 'smem constant byte address 0x4 - core index']
  #allocation1 [shape = 'u32[72,128]{1,0:T(1,128)}', space=vmem, size = 0x9000, scoped, tag = 'internal scratch']
  %s0 = inlined_call_operand.hbm [shape: f32[2,3,2,128], index: 0, kind: input, shape index: {}]
  %s1 = inlined_call_operand.hbm [shape: s32[2,2,128], index: 1, kind: input, shape index: {}]
  %s2 = inlined_call_operand.hbm [shape: f32[2,1,8,128], index: 2, kind: output, shape index: {}]
  %s3 = sld [smem:[#allocation0]]
  $region49: #{tpu_custom_call.1} parent=0
    _
  %s5 = ssub.s32 1, %s3
  %s6 = scalar_select 0, %s5, %s3
  $region1: #{tpu_custom_call.1} parent=0
    #allocation2 [shape = 'u8[6144]{0}', space=vmem, size = 0x1800, scoped, tag = 'input window, operand 0']
    #allocation3 [shape = 's32[2]{0}', space=sflag, size = 0x8, scoped, tag = 'scoped memory for tpu_custom_call.1']
    #allocation4 [shape = 's32[2]{0}', space=sflag, size = 0x8, scoped, tag = 'scoped memory for tpu_custom_call.1']
    #allocation5 [shape = 'u8[2048]{0}', space=vmem, size = 0x800, scoped, tag = 'input window, operand 1']
    #allocation6 [shape = 's32[2]{0}', space=sflag, size = 0x8, scoped, tag = 'scoped memory for tpu_custom_call.1']
    #allocation7 [shape = 'u8[8192]{0}', space=vmem, size = 0x2000, scoped, tag = 'output window, operand 0']
    %7 = vsyncpa [#allocation3], 0
    %s8 = scalar_lea.sflag [#allocation3], 1
    %9 = vsyncpa %s8, 0
    %10 = vsyncpa [#allocation6], 0
    %s11 = scalar_lea.sflag [#allocation6], 1
    %12 = vsyncpa %s11, 0
    %13 = vsyncpa [#allocation4], 0
    %s14 = scalar_lea.sflag [#allocation4], 1
    %15 = vsyncpa %s14, 0
    loop: start=0, step=1, limit=4
    $region2: #{tpu_custom_call.1} parent=1 // loop_pre_header
      _
    $region3: #{tpu_custom_call.1} parent=1 // loop_header
      %s17 = sphi 0, %s21
      %p18 = scmp.ge.s32.totalorder %s17, 4
      %s24 = sphi 0, %s36
      %s25 = sphi 0, %s32
      %s26 = sphi 0, %s24
      %s27 = sphi 0, %s25
      %s28 = sphi 0, %s26
      %s29 = sphi 0, %s27
      %s41 = sphi 0, %s43
      %s44 = sphi 0, %s41
      %s45 = sphi 0, %s44
      %s61 = sphi 0, %s45
      %s69 = sphi 0, %s71
      %s72 = sphi 0, %s69
      %s73 = sphi 0, %s72
      %s89 = sphi 0, %s73
      %s97 = sphi 0, %s99
      %s100 = sphi 0, %s97
      %s101 = sphi 0, %s100
      %s117 = sphi 0, %s101
    $region4: #{tpu_custom_call.1} parent=1 // loop_header_branch
      %20 = sbr.rel (%p18) target = $region8
    $region5: #{tpu_custom_call.1} parent=1 // loop_body
      %s22 = ssub.s32 %s17, 1
      %s23 = ssub.s32 %s17, 2
      %s30 = sadd.s32 1, %s25
      %p31 = scmp.ge.s32.totalorder %s30, 1
      %s32 = scalar_select %p31, 0, %s30
      %s33 = sadd.s32 1, %s24
      %s34 = scalar_select %p31, %s33, %s24
      %p35 = scmp.ge.s32.totalorder %s34, 2
      %s36 = scalar_select %p35, 0, %s34
      %s37 = ssub.s32 %s24, %s36
      %s38 = ssub.s32 %s25, %s32
      %s39 = sor.u32 %s37, %s38
      %p40 = scmp.eq.s32.totalorder %s39, 0
      %s42 = sadd.s32 %s41, 1
      %s43 = scalar_select %p40, %s41, %s42
      %p46 = pneg %p40
      %p47 = scmp.eq.s32.totalorder %s17, 1
      %p48 = por %p46, %p47
      %p49 = scmp.ne.s32.totalorder %s41, %s44
      %p50 = scmp.eq.s32.totalorder %s17, 0
      %p51 = por %p49, %p50
      %p52 = scmp.ne.s32.totalorder %s41, %s44
      %p53 = scmp.eq.s32.totalorder %s22, 1
      %p54 = por %p52, %p53
      %p55 = scmp.ne.s32.totalorder %s44, %s45
      %p56 = scmp.eq.s32.totalorder %s22, 0
      %p57 = por %p55, %p56
      %p58 = scmp.ne.s32.totalorder %s44, %s45
      %p59 = scmp.eq.s32.totalorder %s23, 1
      %p60 = por %p58, %p59
      %p62 = scmp.ne.s32.totalorder %s45, %s61
      %p63 = scmp.eq.s32.totalorder %s23, 0
      %p64 = por %p62, %p63
      %s65 = ssub.s32 %s24, %s36
      %s66 = ssub.s32 %s25, %s32
      %s67 = sor.u32 %s65, %s66
      %p68 = scmp.eq.s32.totalorder %s67, 0
      %s70 = sadd.s32 %s69, 1
      %s71 = scalar_select %p68, %s69, %s70
      %p74 = pneg %p68
      %p75 = scmp.eq.s32.totalorder %s17, 1
      %p76 = por %p74, %p75
      %p77 = scmp.ne.s32.totalorder %s69, %s72
      %p78 = scmp.eq.s32.totalorder %s17, 0
      %p79 = por %p77, %p78
      %p80 = scmp.ne.s32.totalorder %s69, %s72
      %p81 = scmp.eq.s32.totalorder %s22, 1
      %p82 = por %p80, %p81
      %p83 = scmp.ne.s32.totalorder %s72, %s73
      %p84 = scmp.eq.s32.totalorder %s22, 0
      %p85 = por %p83, %p84
      %p86 = scmp.ne.s32.totalorder %s72, %s73
      %p87 = scmp.eq.s32.totalorder %s23, 1
      %p88 = por %p86, %p87
      %p90 = scmp.ne.s32.totalorder %s73, %s89
      %p91 = scmp.eq.s32.totalorder %s23, 0
      %p92 = por %p90, %p91
      %s93 = ssub.s32 %s24, %s36
      %s94 = ssub.s32 %s25, %s32
      %s95 = sor.u32 %s93, %s94
      %p96 = scmp.eq.s32.totalorder %s95, 0
      %s98 = sadd.s32 %s97, 1
      %s99 = scalar_select %p96, %s97, %s98
      %p102 = pneg %p96
      %p103 = scmp.eq.s32.totalorder %s17, 1
      %p104 = por %p102, %p103
      %p105 = scmp.ne.s32.totalorder %s97, %s100
      %p106 = scmp.eq.s32.totalorder %s17, 0
      %p107 = por %p105, %p106
      %p108 = scmp.ne.s32.totalorder %s97, %s100
      %p109 = scmp.eq.s32.totalorder %s22, 1
      %p110 = por %p108, %p109
      %p111 = scmp.ne.s32.totalorder %s100, %s101
      %p112 = scmp.eq.s32.totalorder %s22, 0
      %p113 = por %p111, %p112
      %p114 = scmp.ne.s32.totalorder %s100, %s101
      %p115 = scmp.eq.s32.totalorder %s23, 1
      %p116 = por %p114, %p115
      %p118 = scmp.ne.s32.totalorder %s101, %s117
      %p119 = scmp.eq.s32.totalorder %s23, 0
      %p120 = por %p118, %p119
      %p121 = scmp.le.s32.totalorder 1, %s17
      %p122 = scmp.lt.s32.totalorder %s17, 3
      %p123 = pnand %p121, %p122
      %p124 = pneg %p123
      // Predicated region
      $region9: #{tpu_custom_call.1} parent=5 // pred_check
        _
      $region10: #{tpu_custom_call.1} parent=5 // pred_check_branch
        %126 = sbr.rel (%p123) target = $region12
      $region11: #{tpu_custom_call.1} parent=5 // pred_region
        %s127 = ssub.s32 %s17, 1
      $region12: #{tpu_custom_call.1} parent=5 // pred_fallthru
        _
      %p128 = scmp.lt.s32.totalorder %s17, 2
      // Predicated region
      $region13: #{tpu_custom_call.1} parent=5 // pred_check
        %p129 = pneg %p128
      $region14: #{tpu_custom_call.1} parent=5 // pred_check_branch
        %131 = sbr.rel (%p129) target = $region16
      $region15: #{tpu_custom_call.1} parent=5 // pred_region
        // Predicated region
        $region17: #{tpu_custom_call.1} parent=15 // pred_check
          %p132 = pneg %p51
        $region18: #{tpu_custom_call.1} parent=15 // pred_check_branch
          %134 = sbr.rel (%p132) target = $region20
        $region19: #{tpu_custom_call.1} parent=15 // pred_region
          %s135 = sand.u32 %s41, 1
          %s136 = scalar_lea.sflag [#allocation3], %s135
          %s137 = sand.u32 %s41, 1
          %s138 = smul.addr %s137, 6
          %s139 = scalar_lea.vmem [#allocation2], %s138
          %141 = vsyncadd %s136, 0
          %s142 = smul.addr %s24, 3
          %s143 = sadd.s32 %s25, %s142
          %s144 = smul.addr %s143, 2
          %s145 = scalar_lea.hbm %s0, %s144
          %s146 = sshll.u32 %s145, 4
          %s147 = int_to_ptr.hbm [resolvable:$true] %s146
          %s148 = sshll.u32 %s139, 4
          %s149 = int_to_ptr.vmem [resolvable:$true] %s148
          %154 = dma.hbm_to_vmem [thread:$0]  %s147, 96, %s149, %s136, 32, 32, 2
        $region20: #{tpu_custom_call.1} parent=15 // pred_fallthru
          _
        // Predicated region
        $region21: #{tpu_custom_call.1} parent=15 // pred_check
          %p155 = pneg %p79
        $region22: #{tpu_custom_call.1} parent=15 // pred_check_branch
          %157 = sbr.rel (%p155) target = $region24
        $region23: #{tpu_custom_call.1} parent=15 // pred_region
          %s158 = sand.u32 %s69, 1
          %s159 = scalar_lea.sflag [#allocation6], %s158
          %s160 = sand.u32 %s69, 1
          %s161 = smul.addr %s160, 2
          %s162 = scalar_lea.vmem [#allocation5], %s161
          %164 = vsyncadd %s159, 0
          %s165 = sadd.s32 %s25, %s24
          %s166 = smul.addr %s165, 2
          %s167 = scalar_lea.hbm %s1, %s166
          %s169 = sshll.u32 %s167, 4
          %s170 = int_to_ptr.hbm [resolvable:$true] %s169
          %s171 = sshll.u32 %s162, 4
          %s172 = int_to_ptr.vmem [resolvable:$true] %s171
          %174 = dma.hbm_to_vmem [thread:$0]  %s170, 32, %s172, %s159
        $region24: #{tpu_custom_call.1} parent=15 // pred_fallthru
          _
      $region16: #{tpu_custom_call.1} parent=5 // pred_fallthru
        _
      %p175 = scmp.le.s32.totalorder 1, %s17
      %p176 = scmp.lt.s32.totalorder %s17, 3
      %p177 = pnand %p175, %p176
      %p178 = pneg %p177
      // Predicated region
      $region25: #{tpu_custom_call.1} parent=5 // pred_check
        _
      $region26: #{tpu_custom_call.1} parent=5 // pred_check_branch
        %180 = sbr.rel (%p177) target = $region28
      $region27: #{tpu_custom_call.1} parent=5 // pred_region
        %s181 = ssub.s32 %s17, 1
        %s182 = sand.u32 %s44, 1
        %s183 = scalar_lea.sflag [#allocation3], %s182
        %s184 = sand.u32 %s44, 1
        %s185 = smul.addr %s184, 6
        %s186 = scalar_lea.vmem [#allocation2], %s185
        // Predicated region
        $region29: #{tpu_custom_call.1} parent=27 // pred_check
          %p187 = pneg %p57
        $region30: #{tpu_custom_call.1} parent=27 // pred_check_branch
          %189 = sbr.rel (%p187) target = $region32
        $region31: #{tpu_custom_call.1} parent=27 // pred_region
          %191 = dma.done %s183, 96
        $region32: #{tpu_custom_call.1} parent=27 // pred_fallthru
          _
        %s192 = sand.u32 %s72, 1
        %s193 = scalar_lea.sflag [#allocation6], %s192
        %s194 = sand.u32 %s72, 1
        %s195 = smul.addr %s194, 2
        %s196 = scalar_lea.vmem [#allocation5], %s195
        // Predicated region
        $region33: #{tpu_custom_call.1} parent=27 // pred_check
          %p197 = pneg %p85
        $region34: #{tpu_custom_call.1} parent=27 // pred_check_branch
          %199 = sbr.rel (%p197) target = $region36
        $region35: #{tpu_custom_call.1} parent=27 // pred_region
          %201 = dma.done %s193, 32
        $region36: #{tpu_custom_call.1} parent=27 // pred_fallthru
          _
        %s202 = sand.u32 %s44, 1
        %s203 = scalar_lea.sflag [#allocation3], %s202
        %s204 = sand.u32 %s44, 1
        %s205 = smul.addr %s204, 6
        %s206 = scalar_lea.vmem [#allocation2], %s205
        %p207 = pneg %p57
        %p208 = pneg %p54
        %s209 = sand.u32 %s72, 1
        %s210 = scalar_lea.sflag [#allocation6], %s209
        %s211 = sand.u32 %s72, 1
        %s212 = smul.addr %s211, 2
        %s213 = scalar_lea.vmem [#allocation5], %s212
        %p214 = pneg %p85
        %p215 = pneg %p82
        %p216 = pneg %p113
        %p217 = pneg %p110
        %s218 = sand.u32 %s100, 1
        %s219 = scalar_lea.sflag [#allocation4], %s218
        %s220 = sand.u32 %s100, 1
        %s221 = smul.addr %s220, 8
        %s222 = scalar_lea.vmem [#allocation7], %s221
        %v223 = vld [vmem:[%s196] sm:$0x3]
        %v224 = vld [vmem:[%s186] sm:$0x3]
        %s225 = scalar_lea.vmem %s186, 2 [#allocation2]
        %v226 = vld [vmem:[%s225] sm:$0x3]
        %v227 = vmax.f32 %v224, %v226
        %s228 = scalar_lea.vmem %s186, 4 [#allocation2]
        %v229 = vld [vmem:[%s228] sm:$0x3]
        %v230 = vmax.f32 %v227, %v229
        %v231 = vsub.f32 %v224, %v230
        %v232 = vmul.f32 %v231, 1.442695
        %v233 = vpow.pop %v232
        %v234 = vsub.f32 %v226, %v230
        %v235 = vmul.f32 %v234, 1.442695
        %v236 = vpow.pop %v235
        %v237 = vadd.f32 %v233, %v236
        %vm238 = vcmp.eq.s32.totalorder %v223, 1
        %v239 = vsel %vm238, %v234, %v231
        %v240 = vsel %vm238, %v236, %v233
        %v241 = vsel %vm238, 0.75, 0.25
        %v242 = vsub.f32 %v229, %v230
        %v243 = vmul.f32 %v242, 1.442695
        %v244 = vpow.pop %v243
        %v245 = vadd.f32 %v237, %v244
        %vm246 = vcmp.eq.s32.totalorder %v223, 2
        %v247 = vsel %vm246, %v242, %v239
        %v248 = vsel %vm246, %v244, %v240
        %v249 = vsel %vm246, 0.75, %v241
        %v250 = vlog2.pop %v245
        %v251 = vmul.f32 %v250, 0.6931472
        %v252 = vsub.f32 %v247, %v251
        %v253 = vrcp.pop %v245
        %v254 = vmul.f32 %v245, %v253
        %v255 = vsub.f32 1.0, %v254
        %v256 = vmul.f32 %v253, %v255
        %v257 = vadd.f32 %v253, %v256
        %vm258 = vweird.f32 %v245
        %vm259 = vweird.f32 %v253
        %vm260 = vmor %vm258, %vm259
        %v261 = vsel %vm260, %v253, %v257
        %v262 = vand.u32 2147483647, %v245
        %vm263 = vcmp.eq.f32.partialorder %v262, 8.507059e+37
        %v264 = vand.u32 %v245, 2147483648
        %v265 = vor.u32 1.1754944e-38, %v264
        %v266 = vsel %vm263, %v265, %v261
        %v267 = vmul.f32 %v248, %v266
        %v268 = vsub.f32 1.0, %v267
        %v269 = vmul.f32 %v268, %v268
        %v270 = vmul.f32 %v249, %v269
        %v271 = vmul.f32 %v270, %v252
        %v272 = vsub.f32 0.0, %v271
        %vm273 = vcmask 1041408
        %v274 = vsel %vm273, %v272, 0.0
        %275 = vadd.xlane.f32.xlu0 %v274
        %v276 = vpop.xlane.xlu0 %275
        %v277 = vrot.slane %v276, 4
        %v278 = vadd.f32 %v276, %v277
        %v279 = vrot.slane %v278, 2
        %v280 = vadd.f32 %v278, %v279
        %v281 = vrot.slane %v280, 1
        %v282 = vadd.f32 %v280, %v281
        %s283 = vtos %v282
        %v284 = vstv %s283
        %285 = vst [vmem:[%s222] sm:$0xff] %v284
        %s286 = sand.u32 %s100, 1
        %s287 = scalar_lea.sflag [#allocation4], %s286
        %s288 = sand.u32 %s100, 1
        %s289 = smul.addr %s288, 8
        %s290 = scalar_lea.vmem [#allocation7], %s289
        // Predicated region
        $region37: #{tpu_custom_call.1} parent=27 // pred_check
          %p291 = pneg %p110
        $region38: #{tpu_custom_call.1} parent=27 // pred_check_branch
          %293 = sbr.rel (%p291) target = $region40
        $region39: #{tpu_custom_call.1} parent=27 // pred_region
          %295 = vsyncadd %s287, 0
          %s296 = sadd.s32 %s27, %s26
          %s297 = smul.addr %s296, 8
          %s298 = scalar_lea.hbm %s2, %s297
          %s300 = sshll.u32 %s290, 4
          %s301 = int_to_ptr.vmem [resolvable:$true] %s300
          %s302 = sshll.u32 %s298, 4
          %s303 = int_to_ptr.hbm [resolvable:$true] %s302
          %305 = dma.vmem_to_hbm [thread:$0]  %s301, 128, %s303, %s287
        $region40: #{tpu_custom_call.1} parent=27 // pred_fallthru
          _
      $region28: #{tpu_custom_call.1} parent=5 // pred_fallthru
        _
      %p306 = scmp.le.s32.totalorder 2, %s17
      // Predicated region
      $region41: #{tpu_custom_call.1} parent=5 // pred_check
        %p307 = pneg %p306
      $region42: #{tpu_custom_call.1} parent=5 // pred_check_branch
        %309 = sbr.rel (%p307) target = $region44
      $region43: #{tpu_custom_call.1} parent=5 // pred_region
        %s310 = ssub.s32 %s17, 2
        // Predicated region
        $region45: #{tpu_custom_call.1} parent=43 // pred_check
          %p311 = pneg %p116
        $region46: #{tpu_custom_call.1} parent=43 // pred_check_branch
          %313 = sbr.rel (%p311) target = $region48
        $region47: #{tpu_custom_call.1} parent=43 // pred_region
          %s314 = sand.u32 %s101, 1
          %s315 = scalar_lea.sflag [#allocation4], %s314
          %s316 = sand.u32 %s101, 1
          %s317 = smul.addr %s316, 8
          %s318 = scalar_lea.vmem [#allocation7], %s317
          %320 = dma.done %s315, 128
        $region48: #{tpu_custom_call.1} parent=43 // pred_fallthru
          _
      $region44: #{tpu_custom_call.1} parent=5 // pred_fallthru
        _
    $region6: #{tpu_custom_call.1} parent=1 // loop_footer
      %s21 = sadd.s32 1, %s17
    $region7: #{tpu_custom_call.1} parent=1 // loop_footer_branch
      %16 = sbr.rel target = $region3
    $region8: #{tpu_custom_call.1} parent=1 // loop_exit
      _
    %321 = vsyncpa [#allocation3], 1
    %s322 = scalar_lea.sflag [#allocation3], 1
    %323 = vsyncpa %s322, 1
    %324 = vsyncpa [#allocation6], 1
    %s325 = scalar_lea.sflag [#allocation6], 1
    %326 = vsyncpa %s325, 1
    %327 = vsyncpa [#allocation4], 1
    %s328 = scalar_lea.sflag [#allocation4], 1
    %329 = vsyncpa %s328, 1

</llo_original>
